<compile_context>
chip_gen: v7x
topology: tpu7x:2x2x1
jax: 0.10.0
libtpu: 0.0.40
codegen_flags: <defaults>
</compile_context>

<pallas_src>
import jax
import jax.numpy as jnp
import numpy as np
from jax.experimental import pallas as pl
from jax.experimental.pallas import tpu as pltpu


def _s2d_kernel(x_ref, o_ref):
    # x_ref: (1, tr, 2W)   row-pair-flattened input tile; lane dim is
    #                      [even source row (W) | odd source row (W)]
    # o_ref: (1, 4, tr, W2)
    _, tr, two_w = x_ref.shape
    W = two_w // 2
    W2 = W // 2

    # 0/1 column-de-interleave matrix P (W, W), built on the fly (VPU only):
    #   P[i, j]      = 1  iff  i == 2*j       (even source cols -> slab [0, W2))
    #   P[i, W2 + j] = 1  iff  i == 2*j + 1   (odd  source cols -> slab [W2, W))
    row = jax.lax.broadcasted_iota(jnp.int32, (W, W), 0)
    col = jax.lax.broadcasted_iota(jnp.int32, (W, W), 1)
    src = jnp.where(col < W2, 2 * col, 2 * (col - W2) + 1)
    p = jnp.where(row == src, 1.0, 0.0).astype(x_ref.dtype)

    v = x_ref[0]                                       # (tr, 2W)

    # Two (tr, W) x (W, W) MXU passes (half the FLOPs of a single (2W,2W) one).
    # HIGHEST precision keeps the pure permutation exact for f32 inputs.
    prec = jax.lax.Precision.HIGHEST
    y_even = jnp.dot(v[:, :W], p, preferred_element_type=jnp.float32,
                     precision=prec)                   # even source rows
    y_odd = jnp.dot(v[:, W:], p, preferred_element_type=jnp.float32,
                    precision=prec)                    # odd source rows

    dt = o_ref.dtype
    o_ref[0, 0] = y_even[:, :W2].astype(dt)            # rows ::2 , cols ::2
    o_ref[0, 1] = y_odd[:, :W2].astype(dt)             # rows 1::2, cols ::2
    o_ref[0, 2] = y_even[:, W2:].astype(dt)            # rows ::2 , cols 1::2
    o_ref[0, 3] = y_odd[:, W2:].astype(dt)             # rows 1::2, cols 1::2


def _pick_row_tile(R, W, N, itemsize):
    """Largest 8-aligned divisor of R under a per-step VMEM budget.

    Per grid step the pipeline holds (input tile + output tile) x 2 buffers
    ~= 8 * tr * W * itemsize bytes; keep that under ~16 MiB (vmem_limit is
    raised explicitly in the wrapper).  Prefer tiles whose total step count is
    even (v7x: 2 TensorCores share the parallel grid) and whose row count
    feeds the MXU in full 256/128-row passes.
    """
    budget = 16 * 1024 * 1024
    cap = budget // (8 * W * itemsize)
    cap = max(8, min(1024, cap - cap % 8))
    cands = [d for d in range(8, min(R, cap) + 1, 8) if R % d == 0]
    if not cands:
        return R  # tiny / odd extents: single full-extent block (always legal)

    def score(tr):
        steps = N * (R // tr)
        return (steps == 1 or steps % 2 == 0, tr % 256 == 0, tr % 128 == 0, tr)

    return max(cands, key=score)


@jax.jit
def space_to_depth(x):
    """Pallas TPU implementation of the YOLO space_to_depth module (NCHW)."""
    N, C, H, W = x.shape
    assert H % 2 == 0 and W % 2 == 0, "space_to_depth needs even H and W"
    assert jnp.issubdtype(x.dtype, jnp.floating), "float dtypes only (see TODO)"
    H2, W2 = H // 2, W // 2
    R = C * H2

    # Free (contiguous) reshape: each kernel row is one output row's two source
    # rows flattened onto a single 2W-wide lane dimension, with C folded in.
    xr = x.reshape(N, R, 2 * W)

    tr = _pick_row_tile(R, W, N, x.dtype.itemsize)
    n_tiles = R // tr

    out = pl.pallas_call(
        _s2d_kernel,
        out_shape=jax.ShapeDtypeStruct((N, 4, R, W2), x.dtype),
        grid=(N, n_tiles),
        in_specs=[pl.BlockSpec((1, tr, 2 * W), lambda n, t: (n, t, 0))],
        out_specs=pl.BlockSpec((1, 4, tr, W2), lambda n, t: (n, 0, t, 0)),
        compiler_params=pltpu.CompilerParams(
            dimension_semantics=("parallel", "parallel"),
            vmem_limit_bytes=48 * 1024 * 1024),
    )(xr)

    # Free reshape back to the PyTorch layout (N, 4C, H/2, W/2);
    # channel index = quarter * C + c, matching torch.cat's ordering.
    return out.reshape(N, 4 * C, H2, W2)


def _reference(x):
    return jnp.concatenate(
        [x[..., ::2, ::2], x[..., 1::2, ::2], x[..., ::2, 1::2], x[..., 1::2, 1::2]],
        axis=1)


if __name__ == "__main__":
    key = jax.random.PRNGKey(0)
    N, C, H, W = 2, 4, 16, 16
    x = jax.random.normal(key, (N, C, H, W), jnp.float32)

    out = jax.block_until_ready(space_to_depth(x))

    ref = _reference(x)
    assert out.shape == ref.shape, (out.shape, ref.shape)
    # Pure permutation; with precision=HIGHEST the MXU path is expected to be
    # bit-exact for finite f32 inputs (tolerance is a ulp-level safety margin).
    np.testing.assert_allclose(np.asarray(out), np.asarray(ref), rtol=1e-6, atol=1e-7)

    print("KERNEL_OK")
</pallas_src>

<mosaic_0001>
module attributes {stable_mosaic.version = 11 : i64} {
  func.func @_s2d_kernel(%arg0: i32, %arg1: i32, %arg2: memref<1x32x32xf32, #tpu.memory_space<vmem>>, %arg3: memref<1x4x32x8xf32, #tpu.memory_space<vmem>>) attributes {dimension_semantics = [#tpu.dimension_semantics<parallel>, #tpu.dimension_semantics<parallel>], iteration_bounds = array<i64: 2, 1>, scalar_prefetch = 0 : i64, scratch_operands = 0 : i64, tpu.core_type = #tpu.core_type<tc>, window_params = [{transform_indices = @transform_0, window_bounds = array<i64: 1, 32, 32>}, {transform_indices = @transform_1, window_bounds = array<i64: 1, 4, 32, 8>}]} {
    %0 = tpu.iota {dimensions = array<i32: 0>} : vector<16x16xi32>
    %1 = tpu.iota {dimensions = array<i32: 1>} : vector<16x16xi32>
    %c8_i32 = arith.constant 8 : i32
    %2 = vector.broadcast %c8_i32 : i32 to vector<16x16xi32>
    %3 = arith.cmpi slt, %1, %2 : vector<16x16xi32>
    %c2_i32 = arith.constant 2 : i32
    %4 = vector.broadcast %c2_i32 : i32 to vector<16x16xi32>
    %5 = arith.muli %4, %1 : vector<16x16xi32>
    %c8_i32_0 = arith.constant 8 : i32
    %6 = vector.broadcast %c8_i32_0 : i32 to vector<16x16xi32>
    %7 = arith.subi %1, %6 : vector<16x16xi32>
    %c2_i32_1 = arith.constant 2 : i32
    %8 = vector.broadcast %c2_i32_1 : i32 to vector<16x16xi32>
    %9 = arith.muli %8, %7 : vector<16x16xi32>
    %c1_i32 = arith.constant 1 : i32
    %10 = vector.broadcast %c1_i32 : i32 to vector<16x16xi32>
    %11 = arith.addi %9, %10 : vector<16x16xi32>
    %12 = arith.select %3, %5, %11 : vector<16x16xi1>, vector<16x16xi32>
    %13 = arith.cmpi eq, %0, %12 : vector<16x16xi32>
    %cst = arith.constant 1.000000e+00 : f32
    %cst_2 = arith.constant 0.000000e+00 : f32
    %14 = vector.broadcast %cst : f32 to vector<16x16xf32>
    %15 = vector.broadcast %cst_2 : f32 to vector<16x16xf32>
    %16 = arith.select %13, %14, %15 : vector<16x16xi1>, vector<16x16xf32>
    %c0 = arith.constant 0 : index
    %c0_3 = arith.constant 0 : index
    %c0_4 = arith.constant 0 : index
    %17 = vector.load %arg2[%c0, %c0_3, %c0_4] : memref<1x32x32xf32, #tpu.memory_space<vmem>>, vector<1x32x32xf32>
    %18 = vector.shape_cast %17 : vector<1x32x32xf32> to vector<32x32xf32>
    %19 = vector.extract_strided_slice %18 {offsets = [0, 0], sizes = [32, 16], strides = [1, 1]} : vector<32x32xf32> to vector<32x16xf32>
    %cst_5 = arith.constant dense<0.000000e+00> : vector<32x16xf32>
    %20 = tpu.matmul %19, %16, %cst_5 {dimension_numbers = #tpu.dot_dimension_numbers<[1], [0], [0], [1], [0, 0, 1, 1], [], []>, precision = #tpu.contract_precision<fp32>} : vector<32x16xf32>, vector<16x16xf32>, vector<32x16xf32> -> vector<32x16xf32>
    %21 = vector.extract_strided_slice %18 {offsets = [0, 16], sizes = [32, 16], strides = [1, 1]} : vector<32x32xf32> to vector<32x16xf32>
    %cst_6 = arith.constant dense<0.000000e+00> : vector<32x16xf32>
    %22 = tpu.matmul %21, %16, %cst_6 {dimension_numbers = #tpu.dot_dimension_numbers<[1], [0], [0], [1], [0, 0, 1, 1], [], []>, precision = #tpu.contract_precision<fp32>} : vector<32x16xf32>, vector<16x16xf32>, vector<32x16xf32> -> vector<32x16xf32>
    %23 = vector.extract_strided_slice %20 {offsets = [0, 0], sizes = [32, 8], strides = [1, 1]} : vector<32x16xf32> to vector<32x8xf32>
    %c0_7 = arith.constant 0 : index
    %c0_8 = arith.constant 0 : index
    %c0_9 = arith.constant 0 : index
    %c0_10 = arith.constant 0 : index
    %24 = vector.load %arg3[%c0_7, %c0_8, %c0_9, %c0_10] : memref<1x4x32x8xf32, #tpu.memory_space<vmem>>, vector<1x1x32x8xf32>
    %25 = vector.shape_cast %24 : vector<1x1x32x8xf32> to vector<32x8xf32>
    %26 = vector.shape_cast %23 : vector<32x8xf32> to vector<1x1x32x8xf32>
    tpu.vector_store %arg3[%c0_7, %c0_8, %c0_9, %c0_10], %26 {strides = array<i32>} : memref<1x4x32x8xf32, #tpu.memory_space<vmem>>, vector<1x1x32x8xf32>,
    %27 = vector.extract_strided_slice %22 {offsets = [0, 0], sizes = [32, 8], strides = [1, 1]} : vector<32x16xf32> to vector<32x8xf32>
    %c0_11 = arith.constant 0 : index
    %c1 = arith.constant 1 : index
    %c0_12 = arith.constant 0 : index
    %c0_13 = arith.constant 0 : index
    %28 = vector.load %arg3[%c0_11, %c1, %c0_12, %c0_13] : memref<1x4x32x8xf32, #tpu.memory_space<vmem>>, vector<1x1x32x8xf32>
    %29 = vector.shape_cast %28 : vector<1x1x32x8xf32> to vector<32x8xf32>
    %30 = vector.shape_cast %27 : vector<32x8xf32> to vector<1x1x32x8xf32>
    tpu.vector_store %arg3[%c0_11, %c1, %c0_12, %c0_13], %30 {strides = array<i32>} : memref<1x4x32x8xf32, #tpu.memory_space<vmem>>, vector<1x1x32x8xf32>,
    %31 = vector.extract_strided_slice %20 {offsets = [0, 8], sizes = [32, 8], strides = [1, 1]} : vector<32x16xf32> to vector<32x8xf32>
    %c0_14 = arith.constant 0 : index
    %c2 = arith.constant 2 : index
    %c0_15 = arith.constant 0 : index
    %c0_16 = arith.constant 0 : index
    %32 = vector.load %arg3[%c0_14, %c2, %c0_15, %c0_16] : memref<1x4x32x8xf32, #tpu.memory_space<vmem>>, vector<1x1x32x8xf32>
    %33 = vector.shape_cast %32 : vector<1x1x32x8xf32> to vector<32x8xf32>
    %34 = vector.shape_cast %31 : vector<32x8xf32> to vector<1x1x32x8xf32>
    tpu.vector_store %arg3[%c0_14, %c2, %c0_15, %c0_16], %34 {strides = array<i32>} : memref<1x4x32x8xf32, #tpu.memory_space<vmem>>, vector<1x1x32x8xf32>,
    %35 = vector.extract_strided_slice %22 {offsets = [0, 8], sizes = [32, 8], strides = [1, 1]} : vector<32x16xf32> to vector<32x8xf32>
    %c0_17 = arith.constant 0 : index
    %c3 = arith.constant 3 : index
    %c0_18 = arith.constant 0 : index
    %c0_19 = arith.constant 0 : index
    %36 = vector.load %arg3[%c0_17, %c3, %c0_18, %c0_19] : memref<1x4x32x8xf32, #tpu.memory_space<vmem>>, vector<1x1x32x8xf32>
    %37 = vector.shape_cast %36 : vector<1x1x32x8xf32> to vector<32x8xf32>
    %38 = vector.shape_cast %35 : vector<32x8xf32> to vector<1x1x32x8xf32>
    tpu.vector_store %arg3[%c0_17, %c3, %c0_18, %c0_19], %38 {strides = array<i32>} : memref<1x4x32x8xf32, #tpu.memory_space<vmem>>, vector<1x1x32x8xf32>,
    return
  }
  func.func @transform_0(%arg0: i32, %arg1: i32) -> (i32, i32, i32) {
    %c0_i32 = arith.constant 0 : i32
    %c0_i32_0 = arith.constant 0 : i32
    return %arg0, %arg1, %c0_i32 : i32, i32, i32
  }
  func.func @transform_1(%arg0: i32, %arg1: i32) -> (i32, i32, i32, i32) {
    %c0_i32 = arith.constant 0 : i32
    %c0_i32_0 = arith.constant 0 : i32
    %c0_i32_1 = arith.constant 0 : i32
    return %arg0, %c0_i32, %arg1, %c0_i32_0 : i32, i32, i32, i32
  }
}

</mosaic_0001>

<llo_original>
// kernel: space_to_depth.1
$region0: #{space_to_depth.1}
  #allocation0 [shape = 'u32[]', space=smem, size = 0x4, offset = 0x4, fixed_abs, tag = 'smem constant byte address 0x4 - core index']
  #allocation1 [shape = 'u32[144,128]{1,0:T(1,128)}', space=vmem, size = 0x12000, scoped, tag = 'internal scratch']
  %s0 = inlined_call_operand.vmem [shape: f32[2,32,32], index: 0, kind: input, shape index: {}]
  %s1 = inlined_call_operand.vmem [shape: f32[2,4,32,8], index: 1, kind: output, shape index: {}]
  %s2 = sld [smem:[#allocation0]]
  $region37: #{space_to_depth.1} parent=0
    _
  %s4 = ssub.s32 1, %s2
  %s5 = scalar_select 0, %s4, %s2
  loop: start=0, step=1, limit=4
  $region2: #{space_to_depth.1} parent=0 // loop_pre_header
    _
  $region3: #{space_to_depth.1} parent=0 // loop_header
    %s7 = sphi 0, %s11
    %p8 = scmp.ge.s32.totalorder %s7, 4
    %s14 = sphi 0, %s26
    %s15 = sphi 0, %s22
    %s16 = sphi 0, %s14
    %s17 = sphi 0, %s15
    %s18 = sphi 0, %s16
    %s19 = sphi 0, %s17
    %s31 = sphi 0, %s33
    %s34 = sphi 0, %s31
    %s35 = sphi 0, %s34
    %s51 = sphi 0, %s35
    %s59 = sphi 0, %s61
    %s62 = sphi 0, %s59
    %s63 = sphi 0, %s62
    %s79 = sphi 0, %s63
  $region4: #{space_to_depth.1} parent=0 // loop_header_branch
    %10 = sbr.rel (%p8) target = $region8
  $region5: #{space_to_depth.1} parent=0 // loop_body
    %s12 = ssub.s32 %s7, 1
    %s13 = ssub.s32 %s7, 2
    %s20 = sadd.s32 1, %s15
    %p21 = scmp.ge.s32.totalorder %s20, 1
    %s22 = scalar_select %p21, 0, %s20
    %s23 = sadd.s32 1, %s14
    %s24 = scalar_select %p21, %s23, %s14
    %p25 = scmp.ge.s32.totalorder %s24, 2
    %s26 = scalar_select %p25, 0, %s24
    %s27 = ssub.s32 %s14, %s26
    %s28 = ssub.s32 %s15, %s22
    %s29 = sor.u32 %s27, %s28
    %p30 = scmp.eq.s32.totalorder %s29, 0
    %s32 = sadd.s32 %s31, 1
    %s33 = scalar_select %p30, %s31, %s32
    %p36 = pneg %p30
    %p37 = scmp.eq.s32.totalorder %s7, 1
    %p38 = por %p36, %p37
    %p39 = scmp.ne.s32.totalorder %s31, %s34
    %p40 = scmp.eq.s32.totalorder %s7, 0
    %p41 = por %p39, %p40
    %p42 = scmp.ne.s32.totalorder %s31, %s34
    %p43 = scmp.eq.s32.totalorder %s12, 1
    %p44 = por %p42, %p43
    %p45 = scmp.ne.s32.totalorder %s34, %s35
    %p46 = scmp.eq.s32.totalorder %s12, 0
    %p47 = por %p45, %p46
    %p48 = scmp.ne.s32.totalorder %s34, %s35
    %p49 = scmp.eq.s32.totalorder %s13, 1
    %p50 = por %p48, %p49
    %p52 = scmp.ne.s32.totalorder %s35, %s51
    %p53 = scmp.eq.s32.totalorder %s13, 0
    %p54 = por %p52, %p53
    %s55 = ssub.s32 %s14, %s26
    %s56 = ssub.s32 %s15, %s22
    %s57 = sor.u32 %s55, %s56
    %p58 = scmp.eq.s32.totalorder %s57, 0
    %s60 = sadd.s32 %s59, 1
    %s61 = scalar_select %p58, %s59, %s60
    %p64 = pneg %p58
    %p65 = scmp.eq.s32.totalorder %s7, 1
    %p66 = por %p64, %p65
    %p67 = scmp.ne.s32.totalorder %s59, %s62
    %p68 = scmp.eq.s32.totalorder %s7, 0
    %p69 = por %p67, %p68
    %p70 = scmp.ne.s32.totalorder %s59, %s62
    %p71 = scmp.eq.s32.totalorder %s12, 1
    %p72 = por %p70, %p71
    %p73 = scmp.ne.s32.totalorder %s62, %s63
    %p74 = scmp.eq.s32.totalorder %s12, 0
    %p75 = por %p73, %p74
    %p76 = scmp.ne.s32.totalorder %s62, %s63
    %p77 = scmp.eq.s32.totalorder %s13, 1
    %p78 = por %p76, %p77
    %p80 = scmp.ne.s32.totalorder %s63, %s79
    %p81 = scmp.eq.s32.totalorder %s13, 0
    %p82 = por %p80, %p81
    %p83 = scmp.le.s32.totalorder 1, %s7
    %p84 = scmp.lt.s32.totalorder %s7, 3
    %p85 = pnand %p83, %p84
    %p86 = pneg %p85
    // Predicated region
    $region9: #{space_to_depth.1} parent=5 // pred_check
      _
    $region10: #{space_to_depth.1} parent=5 // pred_check_branch
      %88 = sbr.rel (%p85) target = $region12
    $region11: #{space_to_depth.1} parent=5 // pred_region
      %s89 = ssub.s32 %s7, 1
    $region12: #{space_to_depth.1} parent=5 // pred_fallthru
      _
    %p90 = scmp.lt.s32.totalorder %s7, 2
    // Predicated region
    $region13: #{space_to_depth.1} parent=5 // pred_check
      %p91 = pneg %p90
    $region14: #{space_to_depth.1} parent=5 // pred_check_branch
      %93 = sbr.rel (%p91) target = $region16
    $region15: #{space_to_depth.1} parent=5 // pred_region
      // Predicated region
      $region17: #{space_to_depth.1} parent=15 // pred_check
        %p94 = pneg %p41
      $region18: #{space_to_depth.1} parent=15 // pred_check_branch
        %96 = sbr.rel (%p94) target = $region20
      $region19: #{space_to_depth.1} parent=15 // pred_region
        %s97 = smul.u32 4, %s15
        %p98 = scmp.lt.s32.totalorder %s14, 1
        %s99 = scalar_select %p98, %s14, 1
        %p100 = scmp.lt.s32.totalorder %s97, 3
        %s101 = scalar_select %p100, %s97, 3
        %s102 = smul.addr %s99, 4
        %s103 = sadd.s32 %s101, %s102
        %s104 = smul.addr %s103, 8
        %s105 = scalar_lea.vmem %s0, %s104
        %s106 = smul.u32 4, %s15
      $region20: #{space_to_depth.1} parent=15 // pred_fallthru
        _
    $region16: #{space_to_depth.1} parent=5 // pred_fallthru
      _
    %p107 = scmp.le.s32.totalorder 1, %s7
    %p108 = scmp.lt.s32.totalorder %s7, 3
    %p109 = pnand %p107, %p108
    %p110 = pneg %p109
    // Predicated region
    $region21: #{space_to_depth.1} parent=5 // pred_check
      _
    $region22: #{space_to_depth.1} parent=5 // pred_check_branch
      %112 = sbr.rel (%p109) target = $region24
    $region23: #{space_to_depth.1} parent=5 // pred_region
      %s113 = ssub.s32 %s7, 1
      %s114 = smul.u32 4, %s17
      %p115 = scmp.lt.s32.totalorder %s16, 1
      %s116 = scalar_select %p115, %s16, 1
      %p117 = scmp.lt.s32.totalorder %s114, 3
      %s118 = scalar_select %p117, %s114, 3
      %s119 = smul.addr %s116, 4
      %s120 = sadd.s32 %s118, %s119
      %s121 = smul.addr %s120, 8
      %s122 = scalar_lea.vmem %s0, %s121
      %p123 = pneg %p47
      %p124 = pneg %p44
      %p125 = pneg %p75
      %p126 = pneg %p72
      %s127 = smul.u32 4, %s17
      %p128 = scmp.lt.s32.totalorder %s16, 1
      %s129 = scalar_select %p128, %s16, 1
      %p130 = scmp.lt.s32.totalorder %s127, 3
      %s131 = scalar_select %p130, %s127, 3
      %s132 = smul.addr %s129, 16
      %s133 = sadd.s32 %s131, %s132
      %s134 = smul.addr %s133, 8
      %s135 = scalar_lea.vmem %s1, %s134
      %s136 = smul.u32 4, %s17
      %p137 = scmp.lt.s32.totalorder %s16, 1
      %s138 = scalar_select %p137, %s16, 1
      %p139 = scmp.lt.s32.totalorder %s136, 3
      %s140 = scalar_select %p139, %s136, 3
      %s141 = smul.addr %s138, 4
      %s142 = sadd.s32 %s140, %s141
      %s143 = smul.addr %s142, 8
      %s144 = scalar_lea.vmem %s0, %s143
      %s145 = smul.u32 4, %s17
      %s146 = smul.u32 4, %s17
      %p147 = scmp.lt.s32.totalorder %s16, 1
      %s148 = scalar_select %p147, %s16, 1
      %p149 = scmp.lt.s32.totalorder %s146, 3
      %s150 = scalar_select %p149, %s146, 3
      %s151 = smul.addr %s148, 16
      %s152 = sadd.s32 %s150, %s151
      %s153 = smul.addr %s152, 8
      %s154 = scalar_lea.vmem %s1, %s153
      %s155 = smul.u32 4, %s17
      %v156 = vlaneseq
      %v157 = vshrl.u32 %v156, 7
      %v158 = vadd.s32 %v157, 8
      %v159 = vlaneseq
      %v160 = vand.u32 %v159, 127
      %vm161 = vcmp.lt.s32.totalorder %v160, 8
      %v162 = vmul.u32 %v160, 2
      %v163 = vsub.s32 %v160, 8
      %v164 = vmul.u32 %v163, 2
      %v165 = vadd.s32 %v164, 1
      %v166 = vsel %vm161, %v162, %v165
      %vm167 = vcmp.eq.s32.totalorder %v157, %v166
      %vm168 = vcmp.eq.s32.totalorder %v158, %v166
      %v169 = vsel %vm167, 1.0, 0.0
      %v170 = vsel %vm168, 1.0, 0.0
      %v171 = vld [vmem:[%s144] sm:$0xff]
      %v172 = vld [vmem:[%s144 + $0x8] sm:$0xff]
      %v173 = vld [vmem:[%s144 + $0x10] sm:$0xff]
      %v174 = vld [vmem:[%s144 + $0x18] sm:$0xff]
      %vm175 = vcmask 130048
      %v177 = vsel %vm175, %v171, 0
      %v180 = vsel %vm175, %v172, 0
      %v183 = vsel %vm175, %v173, 0
      %v186 = vsel %vm175, %v174, 0
      %188 = vmatprep.subr.mxu0 0.0
      %189 = vmatpush1.msra.mxu0 %v169
      %190 = vmatprep.subr.mxu0 0.0
      %191 = vmatpush1.msra.mxu0 %v170
      %192 = vmatprep.subr.mxu0 0.0
      %193 = vmatpush1.msra.mxu0 0.0
      %194 = vmatprep.subr.mxu0 0.0
      %195 = vmatpush1.msra.mxu0 0.0
      %196 = vmatprep.subr.mxu0 0.0
      %197 = vmatpush1.msra.mxu0 0.0
      %198 = vmatprep.subr.mxu0 0.0
      %199 = vmatpush1.msra.mxu0 0.0
      %200 = vmatprep.subr.mxu0 0.0
      %201 = vmatpush1.msra.mxu0 0.0
      %202 = vmatprep.subr.mxu0 0.0
      %203 = vmatpush1.msra.mxu0 0.0
      %204 = vmatprep.subr.mxu0 0.0
      %205 = vmatpush1.msra.mxu0 0.0
      %206 = vmatprep.subr.mxu0 0.0
      %207 = vmatpush1.msra.mxu0 0.0
      %208 = vmatprep.subr.mxu0 0.0
      %209 = vmatpush1.msra.mxu0 0.0
      %210 = vmatprep.subr.mxu0 0.0
      %211 = vmatpush1.msra.mxu0 0.0
      %212 = vmatprep.subr.mxu0 0.0
      %213 = vmatpush1.msra.mxu0 0.0
      %214 = vmatprep.subr.mxu0 0.0
      %215 = vmatpush1.msra.mxu0 0.0
      %216 = vmatprep.subr.mxu0 0.0
      %217 = vmatpush1.msra.mxu0 0.0
      %218 = vmatprep.subr.mxu0 0.0
      %219 = vmatpush1.msra.mxu0 0.0
      %220 = vmatprep.subr.mxu0 0.0
      %221 = vmatpush1.msra.mxu0 0.0
      %222 = vmatprep.subr.mxu0 0.0
      %223 = vmatpush1.msra.mxu0 0.0
      %224 = vmatprep.subr.mxu0 0.0
      %225 = vmatpush1.msra.mxu0 0.0
      %226 = vmatprep.subr.mxu0 0.0
      %227 = vmatpush1.msra.mxu0 0.0
      %228 = vmatprep.subr.mxu0 0.0
      %229 = vmatpush1.msra.mxu0 0.0
      %230 = vmatprep.subr.mxu0 0.0
      %231 = vmatpush1.msra.mxu0 0.0
      %232 = vmatprep.subr.mxu0 0.0
      %233 = vmatpush1.msra.mxu0 0.0
      %234 = vmatprep.subr.mxu0 0.0
      %235 = vmatpush1.msra.mxu0 0.0
      %236 = vmatprep.subr.mxu0 0.0
      %237 = vmatpush1.msra.mxu0 0.0
      %238 = vmatprep.subr.mxu0 0.0
      %239 = vmatpush1.msra.mxu0 0.0
      %240 = vmatprep.subr.mxu0 0.0
      %241 = vmatpush1.msra.mxu0 0.0
      %242 = vmatprep.subr.mxu0 0.0
      %243 = vmatpush1.msra.mxu0 0.0
      %244 = vmatprep.subr.mxu0 0.0
      %245 = vmatpush1.msra.mxu0 0.0
      %246 = vmatprep.subr.mxu0 0.0
      %247 = vmatpush1.msra.mxu0 0.0
      %248 = vmatprep.subr.mxu0 0.0
      %249 = vmatpush1.msra.mxu0 0.0
      %250 = vmatprep.subr.mxu0 0.0
      %251 = vmatpush1.msra.mxu0 0.0
      %252 = vmatprep.mubr.f32.mxu0 0.0
      %v253 = vand.u32 %v177, 4294901760
      %v254 = vsub.f32 %v177, %v253
      %v255 = vand.u32 %v254, 4294901760
      %v256 = vsub.f32 %v254, %v255
      %v257 = vand.u32 %v256, 4294901760
      %258 = vmatmul.mubr.f32.gmra.mrb[0].mxu0 %v257
      %v259 = vpop.f32.mrb[0].mxu0
      %v260 = vadd.f32 0.0, %v259
      %v261 = vpop.f32.mrb[0].mxu0
      %262 = vmatprep.mubr.f32.mxu0 0.0
      %v263 = vand.u32 %v180, 4294901760
      %v264 = vsub.f32 %v180, %v263
      %v265 = vand.u32 %v264, 4294901760
      %v266 = vsub.f32 %v264, %v265
      %v267 = vand.u32 %v266, 4294901760
      %268 = vmatmul.mubr.f32.gmra.mrb[0].mxu0 %v267
      %v269 = vpop.f32.mrb[0].mxu0
      %v270 = vadd.f32 0.0, %v269
      %v271 = vpop.f32.mrb[0].mxu0
      %272 = vmatprep.mubr.f32.mxu0 0.0
      %v273 = vand.u32 %v183, 4294901760
      %v274 = vsub.f32 %v183, %v273
      %v275 = vand.u32 %v274, 4294901760
      %v276 = vsub.f32 %v274, %v275
      %v277 = vand.u32 %v276, 4294901760
      %278 = vmatmul.mubr.f32.gmra.mrb[0].mxu0 %v277
      %v279 = vpop.f32.mrb[0].mxu0
      %v280 = vadd.f32 0.0, %v279
      %v281 = vpop.f32.mrb[0].mxu0
      %282 = vmatprep.mubr.f32.mxu0 0.0
      %v283 = vand.u32 %v186, 4294901760
      %v284 = vsub.f32 %v186, %v283
      %v285 = vand.u32 %v284, 4294901760
      %v286 = vsub.f32 %v284, %v285
      %v287 = vand.u32 %v286, 4294901760
      %288 = vmatmul.mubr.f32.gmra.mrb[0].mxu0 %v287
      %v289 = vpop.f32.mrb[0].mxu0
      %v290 = vadd.f32 0.0, %v289
      %v291 = vpop.f32.mrb[0].mxu0
      %292 = vdwg.mxu0
      %293 = vmatprep.subr.mxu0 0.0
      %v294 = vsub.f32 %v169, %v169
      %v295 = vand.u32 %v294, 4294901760
      %v296 = vsub.f32 %v294, %v295
      %v297 = vand.u32 %v296, 4294901760
      %298 = vmatpush1.msra.mxu0 %v297
      %299 = vmatprep.subr.mxu0 0.0
      %v300 = vsub.f32 %v170, %v170
      %v301 = vand.u32 %v300, 4294901760
      %v302 = vsub.f32 %v300, %v301
      %v303 = vand.u32 %v302, 4294901760
      %304 = vmatpush1.msra.mxu0 %v303
      %305 = vmatprep.subr.mxu0 0.0
      %306 = vmatpush1.msra.mxu0 0.0
      %307 = vmatprep.subr.mxu0 0.0
      %308 = vmatpush1.msra.mxu0 0.0
      %309 = vmatprep.subr.mxu0 0.0
      %310 = vmatpush1.msra.mxu0 0.0
      %311 = vmatprep.subr.mxu0 0.0
      %312 = vmatpush1.msra.mxu0 0.0
      %313 = vmatprep.subr.mxu0 0.0
      %314 = vmatpush1.msra.mxu0 0.0
      %315 = vmatprep.subr.mxu0 0.0
      %316 = vmatpush1.msra.mxu0 0.0
      %317 = vmatprep.subr.mxu0 0.0
      %318 = vmatpush1.msra.mxu0 0.0
      %319 = vmatprep.subr.mxu0 0.0
      %320 = vmatpush1.msra.mxu0 0.0
      %321 = vmatprep.subr.mxu0 0.0
      %322 = vmatpush1.msra.mxu0 0.0
      %323 = vmatprep.subr.mxu0 0.0
      %324 = vmatpush1.msra.mxu0 0.0
      %325 = vmatprep.subr.mxu0 0.0
      %326 = vmatpush1.msra.mxu0 0.0
      %327 = vmatprep.subr.mxu0 0.0
      %328 = vmatpush1.msra.mxu0 0.0
      %329 = vmatprep.subr.mxu0 0.0
      %330 = vmatpush1.msra.mxu0 0.0
      %331 = vmatprep.subr.mxu0 0.0
      %332 = vmatpush1.msra.mxu0 0.0
      %333 = vmatprep.subr.mxu0 0.0
      %334 = vmatpush1.msra.mxu0 0.0
      %335 = vmatprep.subr.mxu0 0.0
      %336 = vmatpush1.msra.mxu0 0.0
      %337 = vmatprep.subr.mxu0 0.0
      %338 = vmatpush1.msra.mxu0 0.0
      %339 = vmatprep.subr.mxu0 0.0
      %340 = vmatpush1.msra.mxu0 0.0
      %341 = vmatprep.subr.mxu0 0.0
      %342 = vmatpush1.msra.mxu0 0.0
      %343 = vmatprep.subr.mxu0 0.0
      %344 = vmatpush1.msra.mxu0 0.0
      %345 = vmatprep.subr.mxu0 0.0
      %346 = vmatpush1.msra.mxu0 0.0
      %347 = vmatprep.subr.mxu0 0.0
      %348 = vmatpush1.msra.mxu0 0.0
      %349 = vmatprep.subr.mxu0 0.0
      %350 = vmatpush1.msra.mxu0 0.0
      %351 = vmatprep.subr.mxu0 0.0
      %352 = vmatpush1.msra.mxu0 0.0
      %353 = vmatprep.subr.mxu0 0.0
      %354 = vmatpush1.msra.mxu0 0.0
      %355 = vmatprep.subr.mxu0 0.0
      %356 = vmatpush1.msra.mxu0 0.0
      %357 = vmatprep.subr.mxu0 0.0
      %358 = vmatpush1.msra.mxu0 0.0
      %359 = vmatprep.subr.mxu0 0.0
      %360 = vmatpush1.msra.mxu0 0.0
      %361 = vmatprep.subr.mxu0 0.0
      %362 = vmatpush1.msra.mxu0 0.0
      %363 = vmatprep.subr.mxu0 0.0
      %364 = vmatpush1.msra.mxu0 0.0
      %365 = vmatprep.mubr.f32.mxu0 0.0
      %v366 = vand.u32 %v177, 4294901760
      %367 = vmatmul.mubr.f32.gmra.mrb[0].mxu0 %v366
      %v368 = vpop.f32.mrb[0].mxu0
      %v369 = vadd.f32 %v260, %v368
      %v370 = vpop.f32.mrb[0].mxu0
      %371 = vmatprep.mubr.f32.mxu0 0.0
      %v372 = vand.u32 %v180, 4294901760
      %373 = vmatmul.mubr.f32.gmra.mrb[0].mxu0 %v372
      %v374 = vpop.f32.mrb[0].mxu0
      %v375 = vadd.f32 %v270, %v374
      %v376 = vpop.f32.mrb[0].mxu0
      %377 = vmatprep.mubr.f32.mxu0 0.0
      %v378 = vand.u32 %v183, 4294901760
      %379 = vmatmul.mubr.f32.gmra.mrb[0].mxu0 %v378
      %v380 = vpop.f32.mrb[0].mxu0
      %v381 = vadd.f32 %v280, %v380
      %v382 = vpop.f32.mrb[0].mxu0
      %383 = vmatprep.mubr.f32.mxu0 0.0
      %v384 = vand.u32 %v186, 4294901760
      %385 = vmatmul.mubr.f32.gmra.mrb[0].mxu0 %v384
      %v386 = vpop.f32.mrb[0].mxu0
      %v387 = vadd.f32 %v290, %v386
      %v388 = vpop.f32.mrb[0].mxu0
      %389 = vdwg.mxu0
      %390 = vmatprep.subr.mxu0 0.0
      %v391 = vsub.f32 %v169, %v169
      %392 = vmatpush1.msra.mxu0 %v391
      %393 = vmatprep.subr.mxu0 0.0
      %v394 = vsub.f32 %v170, %v170
      %395 = vmatpush1.msra.mxu0 %v394
      %396 = vmatprep.subr.mxu0 0.0
      %397 = vmatpush1.msra.mxu0 0.0
      %398 = vmatprep.subr.mxu0 0.0
      %399 = vmatpush1.msra.mxu0 0.0
      %400 = vmatprep.subr.mxu0 0.0
      %401 = vmatpush1.msra.mxu0 0.0
      %402 = vmatprep.subr.mxu0 0.0
      %403 = vmatpush1.msra.mxu0 0.0
      %404 = vmatprep.subr.mxu0 0.0
      %405 = vmatpush1.msra.mxu0 0.0
      %406 = vmatprep.subr.mxu0 0.0
      %407 = vmatpush1.msra.mxu0 0.0
      %408 = vmatprep.subr.mxu0 0.0
      %409 = vmatpush1.msra.mxu0 0.0
      %410 = vmatprep.subr.mxu0 0.0
      %411 = vmatpush1.msra.mxu0 0.0
      %412 = vmatprep.subr.mxu0 0.0
      %413 = vmatpush1.msra.mxu0 0.0
      %414 = vmatprep.subr.mxu0 0.0
      %415 = vmatpush1.msra.mxu0 0.0
      %416 = vmatprep.subr.mxu0 0.0
      %417 = vmatpush1.msra.mxu0 0.0
      %418 = vmatprep.subr.mxu0 0.0
      %419 = vmatpush1.msra.mxu0 0.0
      %420 = vmatprep.subr.mxu0 0.0
      %421 = vmatpush1.msra.mxu0 0.0
      %422 = vmatprep.subr.mxu0 0.0
      %423 = vmatpush1.msra.mxu0 0.0
      %424 = vmatprep.subr.mxu0 0.0
      %425 = vmatpush1.msra.mxu0 0.0
      %426 = vmatprep.subr.mxu0 0.0
      %427 = vmatpush1.msra.mxu0 0.0
      %428 = vmatprep.subr.mxu0 0.0
      %429 = vmatpush1.msra.mxu0 0.0
      %430 = vmatprep.subr.mxu0 0.0
      %431 = vmatpush1.msra.mxu0 0.0
      %432 = vmatprep.subr.mxu0 0.0
      %433 = vmatpush1.msra.mxu0 0.0
      %434 = vmatprep.subr.mxu0 0.0
      %435 = vmatpush1.msra.mxu0 0.0
      %436 = vmatprep.subr.mxu0 0.0
      %437 = vmatpush1.msra.mxu0 0.0
      %438 = vmatprep.subr.mxu0 0.0
      %439 = vmatpush1.msra.mxu0 0.0
      %440 = vmatprep.subr.mxu0 0.0
      %441 = vmatpush1.msra.mxu0 0.0
      %442 = vmatprep.subr.mxu0 0.0
      %443 = vmatpush1.msra.mxu0 0.0
      %444 = vmatprep.subr.mxu0 0.0
      %445 = vmatpush1.msra.mxu0 0.0
      %446 = vmatprep.subr.mxu0 0.0
      %447 = vmatpush1.msra.mxu0 0.0
      %448 = vmatprep.subr.mxu0 0.0
      %449 = vmatpush1.msra.mxu0 0.0
      %450 = vmatprep.subr.mxu0 0.0
      %451 = vmatpush1.msra.mxu0 0.0
      %452 = vmatprep.subr.mxu0 0.0
      %453 = vmatpush1.msra.mxu0 0.0
      %454 = vmatprep.subr.mxu0 0.0
      %455 = vmatpush1.msra.mxu0 0.0
      %456 = vmatprep.mubr.f32.mxu0 0.0
      %v457 = vand.u32 %v177, 4294901760
      %v458 = vsub.f32 %v177, %v457
      %459 = vmatmul.mubr.f32.gmra.mrb[0].mxu0 %v458
      %v460 = vpop.f32.mrb[0].mxu0
      %v461 = vadd.f32 %v369, %v460
      %v462 = vpop.f32.mrb[0].mxu0
      %463 = vmatprep.mubr.f32.mxu0 0.0
      %v464 = vand.u32 %v180, 4294901760
      %v465 = vsub.f32 %v180, %v464
      %466 = vmatmul.mubr.f32.gmra.mrb[0].mxu0 %v465
      %v467 = vpop.f32.mrb[0].mxu0
      %v468 = vadd.f32 %v375, %v467
      %v469 = vpop.f32.mrb[0].mxu0
      %470 = vmatprep.mubr.f32.mxu0 0.0
      %v471 = vand.u32 %v183, 4294901760
      %v472 = vsub.f32 %v183, %v471
      %473 = vmatmul.mubr.f32.gmra.mrb[0].mxu0 %v472
      %v474 = vpop.f32.mrb[0].mxu0
      %v475 = vadd.f32 %v381, %v474
      %v476 = vpop.f32.mrb[0].mxu0
      %477 = vmatprep.mubr.f32.mxu0 0.0
      %v478 = vand.u32 %v186, 4294901760
      %v479 = vsub.f32 %v186, %v478
      %480 = vmatmul.mubr.f32.gmra.mrb[0].mxu0 %v479
      %v481 = vpop.f32.mrb[0].mxu0
      %v482 = vadd.f32 %v387, %v481
      %v483 = vpop.f32.mrb[0].mxu0
      %484 = vdwg.mxu0
      %485 = vmatprep.subr.mxu0 0.0
      %486 = vmatpush1.msra.mxu0 %v169
      %487 = vmatprep.subr.mxu0 0.0
      %488 = vmatpush1.msra.mxu0 %v170
      %489 = vmatprep.subr.mxu0 0.0
      %490 = vmatpush1.msra.mxu0 0.0
      %491 = vmatprep.subr.mxu0 0.0
      %492 = vmatpush1.msra.mxu0 0.0
      %493 = vmatprep.subr.mxu0 0.0
      %494 = vmatpush1.msra.mxu0 0.0
      %495 = vmatprep.subr.mxu0 0.0
      %496 = vmatpush1.msra.mxu0 0.0
      %497 = vmatprep.subr.mxu0 0.0
      %498 = vmatpush1.msra.mxu0 0.0
      %499 = vmatprep.subr.mxu0 0.0
      %500 = vmatpush1.msra.mxu0 0.0
      %501 = vmatprep.subr.mxu0 0.0
      %502 = vmatpush1.msra.mxu0 0.0
      %503 = vmatprep.subr.mxu0 0.0
      %504 = vmatpush1.msra.mxu0 0.0
      %505 = vmatprep.subr.mxu0 0.0
      %506 = vmatpush1.msra.mxu0 0.0
      %507 = vmatprep.subr.mxu0 0.0
      %508 = vmatpush1.msra.mxu0 0.0
      %509 = vmatprep.subr.mxu0 0.0
      %510 = vmatpush1.msra.mxu0 0.0
      %511 = vmatprep.subr.mxu0 0.0
      %512 = vmatpush1.msra.mxu0 0.0
      %513 = vmatprep.subr.mxu0 0.0
      %514 = vmatpush1.msra.mxu0 0.0
      %515 = vmatprep.subr.mxu0 0.0
      %516 = vmatpush1.msra.mxu0 0.0
      %517 = vmatprep.subr.mxu0 0.0
      %518 = vmatpush1.msra.mxu0 0.0
      %519 = vmatprep.subr.mxu0 0.0
      %520 = vmatpush1.msra.mxu0 0.0
      %521 = vmatprep.subr.mxu0 0.0
      %522 = vmatpush1.msra.mxu0 0.0
      %523 = vmatprep.subr.mxu0 0.0
      %524 = vmatpush1.msra.mxu0 0.0
      %525 = vmatprep.subr.mxu0 0.0
      %526 = vmatpush1.msra.mxu0 0.0
      %527 = vmatprep.subr.mxu0 0.0
      %528 = vmatpush1.msra.mxu0 0.0
      %529 = vmatprep.subr.mxu0 0.0
      %530 = vmatpush1.msra.mxu0 0.0
      %531 = vmatprep.subr.mxu0 0.0
      %532 = vmatpush1.msra.mxu0 0.0
      %533 = vmatprep.subr.mxu0 0.0
      %534 = vmatpush1.msra.mxu0 0.0
      %535 = vmatprep.subr.mxu0 0.0
      %536 = vmatpush1.msra.mxu0 0.0
      %537 = vmatprep.subr.mxu0 0.0
      %538 = vmatpush1.msra.mxu0 0.0
      %539 = vmatprep.subr.mxu0 0.0
      %540 = vmatpush1.msra.mxu0 0.0
      %541 = vmatprep.subr.mxu0 0.0
      %542 = vmatpush1.msra.mxu0 0.0
      %543 = vmatprep.subr.mxu0 0.0
      %544 = vmatpush1.msra.mxu0 0.0
      %545 = vmatprep.subr.mxu0 0.0
      %546 = vmatpush1.msra.mxu0 0.0
      %547 = vmatprep.subr.mxu0 0.0
      %548 = vmatpush1.msra.mxu0 0.0
      %549 = vmatprep.mubr.f32.mxu0 0.0
      %v550 = vand.u32 %v177, 4294901760
      %v551 = vsub.f32 %v177, %v550
      %v552 = vand.u32 %v551, 4294901760
      %553 = vmatmul.mubr.f32.gmra.mrb[0].mxu0 %v552
      %v554 = vpop.f32.mrb[0].mxu0
      %v555 = vadd.f32 %v461, %v554
      %v556 = vpop.f32.mrb[0].mxu0
      %557 = vmatprep.mubr.f32.mxu0 0.0
      %v558 = vand.u32 %v180, 4294901760
      %v559 = vsub.f32 %v180, %v558
      %v560 = vand.u32 %v559, 4294901760
      %561 = vmatmul.mubr.f32.gmra.mrb[0].mxu0 %v560
      %v562 = vpop.f32.mrb[0].mxu0
      %v563 = vadd.f32 %v468, %v562
      %v564 = vpop.f32.mrb[0].mxu0
      %565 = vmatprep.mubr.f32.mxu0 0.0
      %v566 = vand.u32 %v183, 4294901760
      %v567 = vsub.f32 %v183, %v566
      %v568 = vand.u32 %v567, 4294901760
      %569 = vmatmul.mubr.f32.gmra.mrb[0].mxu0 %v568
      %v570 = vpop.f32.mrb[0].mxu0
      %v571 = vadd.f32 %v475, %v570
      %v572 = vpop.f32.mrb[0].mxu0
      %573 = vmatprep.mubr.f32.mxu0 0.0
      %v574 = vand.u32 %v186, 4294901760
      %v575 = vsub.f32 %v186, %v574
      %v576 = vand.u32 %v575, 4294901760
      %577 = vmatmul.mubr.f32.gmra.mrb[0].mxu0 %v576
      %v578 = vpop.f32.mrb[0].mxu0
      %v579 = vadd.f32 %v482, %v578
      %v580 = vpop.f32.mrb[0].mxu0
      %581 = vdwg.mxu0
      %582 = vmatprep.subr.mxu0 0.0
      %v583 = vsub.f32 %v169, %v169
      %v584 = vand.u32 %v583, 4294901760
      %585 = vmatpush1.msra.mxu0 %v584
      %586 = vmatprep.subr.mxu0 0.0
      %v587 = vsub.f32 %v170, %v170
      %v588 = vand.u32 %v587, 4294901760
      %589 = vmatpush1.msra.mxu0 %v588
      %590 = vmatprep.subr.mxu0 0.0
      %591 = vmatpush1.msra.mxu0 0.0
      %592 = vmatprep.subr.mxu0 0.0
      %593 = vmatpush1.msra.mxu0 0.0
      %594 = vmatprep.subr.mxu0 0.0
      %595 = vmatpush1.msra.mxu0 0.0
      %596 = vmatprep.subr.mxu0 0.0
      %597 = vmatpush1.msra.mxu0 0.0
      %598 = vmatprep.subr.mxu0 0.0
      %599 = vmatpush1.msra.mxu0 0.0
      %600 = vmatprep.subr.mxu0 0.0
      %601 = vmatpush1.msra.mxu0 0.0
      %602 = vmatprep.subr.mxu0 0.0
      %603 = vmatpush1.msra.mxu0 0.0
      %604 = vmatprep.subr.mxu0 0.0
      %605 = vmatpush1.msra.mxu0 0.0
      %606 = vmatprep.subr.mxu0 0.0
      %607 = vmatpush1.msra.mxu0 0.0
      %608 = vmatprep.subr.mxu0 0.0
      %609 = vmatpush1.msra.mxu0 0.0
      %610 = vmatprep.subr.mxu0 0.0
      %611 = vmatpush1.msra.mxu0 0.0
      %612 = vmatprep.subr.mxu0 0.0
      %613 = vmatpush1.msra.mxu0 0.0
      %614 = vmatprep.subr.mxu0 0.0
      %615 = vmatpush1.msra.mxu0 0.0
      %616 = vmatprep.subr.mxu0 0.0
      %617 = vmatpush1.msra.mxu0 0.0
      %618 = vmatprep.subr.mxu0 0.0
      %619 = vmatpush1.msra.mxu0 0.0
      %620 = vmatprep.subr.mxu0 0.0
      %621 = vmatpush1.msra.mxu0 0.0
      %622 = vmatprep.subr.mxu0 0.0
      %623 = vmatpush1.msra.mxu0 0.0
      %624 = vmatprep.subr.mxu0 0.0
      %625 = vmatpush1.msra.mxu0 0.0
      %626 = vmatprep.subr.mxu0 0.0
      %627 = vmatpush1.msra.mxu0 0.0
      %628 = vmatprep.subr.mxu0 0.0
      %629 = vmatpush1.msra.mxu0 0.0
      %630 = vmatprep.subr.mxu0 0.0
      %631 = vmatpush1.msra.mxu0 0.0
      %632 = vmatprep.subr.mxu0 0.0
      %633 = vmatpush1.msra.mxu0 0.0
      %634 = vmatprep.subr.mxu0 0.0
      %635 = vmatpush1.msra.mxu0 0.0
      %636 = vmatprep.subr.mxu0 0.0
      %637 = vmatpush1.msra.mxu0 0.0
      %638 = vmatprep.subr.mxu0 0.0
      %639 = vmatpush1.msra.mxu0 0.0
      %640 = vmatprep.subr.mxu0 0.0
      %641 = vmatpush1.msra.mxu0 0.0
      %642 = vmatprep.subr.mxu0 0.0
      %643 = vmatpush1.msra.mxu0 0.0
      %644 = vmatprep.subr.mxu0 0.0
      %645 = vmatpush1.msra.mxu0 0.0
      %646 = vmatprep.subr.mxu0 0.0
      %647 = vmatpush1.msra.mxu0 0.0
      %648 = vmatprep.subr.mxu0 0.0
      %649 = vmatpush1.msra.mxu0 0.0
      %650 = vmatprep.mubr.f32.mxu0 0.0
      %v651 = vand.u32 %v177, 4294901760
      %652 = vmatmul.mubr.f32.gmra.mrb[0].mxu0 %v651
      %v653 = vpop.f32.mrb[0].mxu0
      %v654 = vadd.f32 %v555, %v653
      %v655 = vpop.f32.mrb[0].mxu0
      %656 = vmatprep.mubr.f32.mxu0 0.0
      %v657 = vand.u32 %v180, 4294901760
      %658 = vmatmul.mubr.f32.gmra.mrb[0].mxu0 %v657
      %v659 = vpop.f32.mrb[0].mxu0
      %v660 = vadd.f32 %v563, %v659
      %v661 = vpop.f32.mrb[0].mxu0
      %662 = vmatprep.mubr.f32.mxu0 0.0
      %v663 = vand.u32 %v183, 4294901760
      %664 = vmatmul.mubr.f32.gmra.mrb[0].mxu0 %v663
      %v665 = vpop.f32.mrb[0].mxu0
      %v666 = vadd.f32 %v571, %v665
      %v667 = vpop.f32.mrb[0].mxu0
      %668 = vmatprep.mubr.f32.mxu0 0.0
      %v669 = vand.u32 %v186, 4294901760
      %670 = vmatmul.mubr.f32.gmra.mrb[0].mxu0 %v669
      %v671 = vpop.f32.mrb[0].mxu0
      %v672 = vadd.f32 %v579, %v671
      %v673 = vpop.f32.mrb[0].mxu0
      %674 = vdwg.mxu0
      %675 = vmatprep.subr.mxu0 0.0
      %676 = vmatpush1.msra.mxu0 %v169
      %677 = vmatprep.subr.mxu0 0.0
      %678 = vmatpush1.msra.mxu0 %v170
      %679 = vmatprep.subr.mxu0 0.0
      %680 = vmatpush1.msra.mxu0 0.0
      %681 = vmatprep.subr.mxu0 0.0
      %682 = vmatpush1.msra.mxu0 0.0
      %683 = vmatprep.subr.mxu0 0.0
      %684 = vmatpush1.msra.mxu0 0.0
      %685 = vmatprep.subr.mxu0 0.0
      %686 = vmatpush1.msra.mxu0 0.0
      %687 = vmatprep.subr.mxu0 0.0
      %688 = vmatpush1.msra.mxu0 0.0
      %689 = vmatprep.subr.mxu0 0.0
      %690 = vmatpush1.msra.mxu0 0.0
      %691 = vmatprep.subr.mxu0 0.0
      %692 = vmatpush1.msra.mxu0 0.0
      %693 = vmatprep.subr.mxu0 0.0
      %694 = vmatpush1.msra.mxu0 0.0
      %695 = vmatprep.subr.mxu0 0.0
      %696 = vmatpush1.msra.mxu0 0.0
      %697 = vmatprep.subr.mxu0 0.0
      %698 = vmatpush1.msra.mxu0 0.0
      %699 = vmatprep.subr.mxu0 0.0
      %700 = vmatpush1.msra.mxu0 0.0
      %701 = vmatprep.subr.mxu0 0.0
      %702 = vmatpush1.msra.mxu0 0.0
      %703 = vmatprep.subr.mxu0 0.0
      %704 = vmatpush1.msra.mxu0 0.0
      %705 = vmatprep.subr.mxu0 0.0
      %706 = vmatpush1.msra.mxu0 0.0
      %707 = vmatprep.subr.mxu0 0.0
      %708 = vmatpush1.msra.mxu0 0.0
      %709 = vmatprep.subr.mxu0 0.0
      %710 = vmatpush1.msra.mxu0 0.0
      %711 = vmatprep.subr.mxu0 0.0
      %712 = vmatpush1.msra.mxu0 0.0
      %713 = vmatprep.subr.mxu0 0.0
      %714 = vmatpush1.msra.mxu0 0.0
      %715 = vmatprep.subr.mxu0 0.0
      %716 = vmatpush1.msra.mxu0 0.0
      %717 = vmatprep.subr.mxu0 0.0
      %718 = vmatpush1.msra.mxu0 0.0
      %719 = vmatprep.subr.mxu0 0.0
      %720 = vmatpush1.msra.mxu0 0.0
      %721 = vmatprep.subr.mxu0 0.0
      %722 = vmatpush1.msra.mxu0 0.0
      %723 = vmatprep.subr.mxu0 0.0
      %724 = vmatpush1.msra.mxu0 0.0
      %725 = vmatprep.subr.mxu0 0.0
      %726 = vmatpush1.msra.mxu0 0.0
      %727 = vmatprep.subr.mxu0 0.0
      %728 = vmatpush1.msra.mxu0 0.0
      %729 = vmatprep.subr.mxu0 0.0
      %730 = vmatpush1.msra.mxu0 0.0
      %731 = vmatprep.subr.mxu0 0.0
      %732 = vmatpush1.msra.mxu0 0.0
      %733 = vmatprep.subr.mxu0 0.0
      %734 = vmatpush1.msra.mxu0 0.0
      %735 = vmatprep.subr.mxu0 0.0
      %736 = vmatpush1.msra.mxu0 0.0
      %737 = vmatprep.subr.mxu0 0.0
      %738 = vmatpush1.msra.mxu0 0.0
      %739 = vmatprep.mubr.f32.mxu0 0.0
      %v740 = vand.u32 %v177, 4294901760
      %741 = vmatmul.mubr.f32.gmra.mrb[0].mxu0 %v740
      %v742 = vpop.f32.mrb[0].mxu0
      %v743 = vadd.f32 %v654, %v742
      %v744 = vpop.f32.mrb[0].mxu0
      %745 = vmatprep.mubr.f32.mxu0 0.0
      %v746 = vand.u32 %v180, 4294901760
      %747 = vmatmul.mubr.f32.gmra.mrb[0].mxu0 %v746
      %v748 = vpop.f32.mrb[0].mxu0
      %v749 = vadd.f32 %v660, %v748
      %v750 = vpop.f32.mrb[0].mxu0
      %751 = vmatprep.mubr.f32.mxu0 0.0
      %v752 = vand.u32 %v183, 4294901760
      %753 = vmatmul.mubr.f32.gmra.mrb[0].mxu0 %v752
      %v754 = vpop.f32.mrb[0].mxu0
      %v755 = vadd.f32 %v666, %v754
      %v756 = vpop.f32.mrb[0].mxu0
      %757 = vmatprep.mubr.f32.mxu0 0.0
      %v758 = vand.u32 %v186, 4294901760
      %759 = vmatmul.mubr.f32.gmra.mrb[0].mxu0 %v758
      %v760 = vpop.f32.mrb[0].mxu0
      %v761 = vadd.f32 %v672, %v760
      %v762 = vpop.f32.mrb[0].mxu0
      %763 = vdwg.mxu0
      %764 = vrot.lane.b32.xlu0 %v171, 112
      %v765 = vpop.permute.xlu0 %764
      %766 = vrot.lane.b32.xlu0 %v172, 112
      %v767 = vpop.permute.xlu0 %766
      %768 = vrot.lane.b32.xlu0 %v173, 112
      %v769 = vpop.permute.xlu0 %768
      %770 = vrot.lane.b32.xlu0 %v174, 112
      %v771 = vpop.permute.xlu0 %770
      %v772 = vsel %vm175, %v765, 0
      %v774 = vsel %vm175, %v767, 0
      %v776 = vsel %vm175, %v769, 0
      %v778 = vsel %vm175, %v771, 0
      %780 = vmatprep.subr.mxu0 0.0
      %781 = vmatpush1.msra.mxu0 %v169
      %782 = vmatprep.subr.mxu0 0.0
      %783 = vmatpush1.msra.mxu0 %v170
      %784 = vmatprep.subr.mxu0 0.0
      %785 = vmatpush1.msra.mxu0 0.0
      %786 = vmatprep.subr.mxu0 0.0
      %787 = vmatpush1.msra.mxu0 0.0
      %788 = vmatprep.subr.mxu0 0.0
      %789 = vmatpush1.msra.mxu0 0.0
      %790 = vmatprep.subr.mxu0 0.0
      %791 = vmatpush1.msra.mxu0 0.0
      %792 = vmatprep.subr.mxu0 0.0
      %793 = vmatpush1.msra.mxu0 0.0
      %794 = vmatprep.subr.mxu0 0.0
      %795 = vmatpush1.msra.mxu0 0.0
      %796 = vmatprep.subr.mxu0 0.0
      %797 = vmatpush1.msra.mxu0 0.0
      %798 = vmatprep.subr.mxu0 0.0
      %799 = vmatpush1.msra.mxu0 0.0
      %800 = vmatprep.subr.mxu0 0.0
      %801 = vmatpush1.msra.mxu0 0.0
      %802 = vmatprep.subr.mxu0 0.0
      %803 = vmatpush1.msra.mxu0 0.0
      %804 = vmatprep.subr.mxu0 0.0
      %805 = vmatpush1.msra.mxu0 0.0
      %806 = vmatprep.subr.mxu0 0.0
      %807 = vmatpush1.msra.mxu0 0.0
      %808 = vmatprep.subr.mxu0 0.0
      %809 = vmatpush1.msra.mxu0 0.0
      %810 = vmatprep.subr.mxu0 0.0
      %811 = vmatpush1.msra.mxu0 0.0
      %812 = vmatprep.subr.mxu0 0.0
      %813 = vmatpush1.msra.mxu0 0.0
      %814 = vmatprep.subr.mxu0 0.0
      %815 = vmatpush1.msra.mxu0 0.0
      %816 = vmatprep.subr.mxu0 0.0
      %817 = vmatpush1.msra.mxu0 0.0
      %818 = vmatprep.subr.mxu0 0.0
      %819 = vmatpush1.msra.mxu0 0.0
      %820 = vmatprep.subr.mxu0 0.0
      %821 = vmatpush1.msra.mxu0 0.0
      %822 = vmatprep.subr.mxu0 0.0
      %823 = vmatpush1.msra.mxu0 0.0
      %824 = vmatprep.subr.mxu0 0.0
      %825 = vmatpush1.msra.mxu0 0.0
      %826 = vmatprep.subr.mxu0 0.0
      %827 = vmatpush1.msra.mxu0 0.0
      %828 = vmatprep.subr.mxu0 0.0
      %829 = vmatpush1.msra.mxu0 0.0
      %830 = vmatprep.subr.mxu0 0.0
      %831 = vmatpush1.msra.mxu0 0.0
      %832 = vmatprep.subr.mxu0 0.0
      %833 = vmatpush1.msra.mxu0 0.0
      %834 = vmatprep.subr.mxu0 0.0
      %835 = vmatpush1.msra.mxu0 0.0
      %836 = vmatprep.subr.mxu0 0.0
      %837 = vmatpush1.msra.mxu0 0.0
      %838 = vmatprep.subr.mxu0 0.0
      %839 = vmatpush1.msra.mxu0 0.0
      %840 = vmatprep.subr.mxu0 0.0
      %841 = vmatpush1.msra.mxu0 0.0
      %842 = vmatprep.subr.mxu0 0.0
      %843 = vmatpush1.msra.mxu0 0.0
      %844 = vmatprep.mubr.f32.mxu0 0.0
      %v845 = vand.u32 %v772, 4294901760
      %v846 = vsub.f32 %v772, %v845
      %v847 = vand.u32 %v846, 4294901760
      %v848 = vsub.f32 %v846, %v847
      %v849 = vand.u32 %v848, 4294901760
      %850 = vmatmul.mubr.f32.gmra.mrb[0].mxu0 %v849
      %v851 = vpop.f32.mrb[0].mxu0
      %v852 = vadd.f32 0.0, %v851
      %v853 = vpop.f32.mrb[0].mxu0
      %854 = vmatprep.mubr.f32.mxu0 0.0
      %v855 = vand.u32 %v774, 4294901760
      %v856 = vsub.f32 %v774, %v855
      %v857 = vand.u32 %v856, 4294901760
      %v858 = vsub.f32 %v856, %v857
      %v859 = vand.u32 %v858, 4294901760
      %860 = vmatmul.mubr.f32.gmra.mrb[0].mxu0 %v859
      %v861 = vpop.f32.mrb[0].mxu0
      %v862 = vadd.f32 0.0, %v861
      %v863 = vpop.f32.mrb[0].mxu0
      %864 = vmatprep.mubr.f32.mxu0 0.0
      %v865 = vand.u32 %v776, 4294901760
      %v866 = vsub.f32 %v776, %v865
      %v867 = vand.u32 %v866, 4294901760
      %v868 = vsub.f32 %v866, %v867
      %v869 = vand.u32 %v868, 4294901760
      %870 = vmatmul.mubr.f32.gmra.mrb[0].mxu0 %v869
      %v871 = vpop.f32.mrb[0].mxu0
      %v872 = vadd.f32 0.0, %v871
      %v873 = vpop.f32.mrb[0].mxu0
      %874 = vmatprep.mubr.f32.mxu0 0.0
      %v875 = vand.u32 %v778, 4294901760
      %v876 = vsub.f32 %v778, %v875
      %v877 = vand.u32 %v876, 4294901760
      %v878 = vsub.f32 %v876, %v877
      %v879 = vand.u32 %v878, 4294901760
      %880 = vmatmul.mubr.f32.gmra.mrb[0].mxu0 %v879
      %v881 = vpop.f32.mrb[0].mxu0
      %v882 = vadd.f32 0.0, %v881
      %v883 = vpop.f32.mrb[0].mxu0
      %884 = vdwg.mxu0
      %885 = vmatprep.subr.mxu0 0.0
      %v886 = vsub.f32 %v169, %v169
      %v887 = vand.u32 %v886, 4294901760
      %v888 = vsub.f32 %v886, %v887
      %v889 = vand.u32 %v888, 4294901760
      %890 = vmatpush1.msra.mxu0 %v889
      %891 = vmatprep.subr.mxu0 0.0
      %v892 = vsub.f32 %v170, %v170
      %v893 = vand.u32 %v892, 4294901760
      %v894 = vsub.f32 %v892, %v893
      %v895 = vand.u32 %v894, 4294901760
      %896 = vmatpush1.msra.mxu0 %v895
      %897 = vmatprep.subr.mxu0 0.0
      %898 = vmatpush1.msra.mxu0 0.0
      %899 = vmatprep.subr.mxu0 0.0
      %900 = vmatpush1.msra.mxu0 0.0
      %901 = vmatprep.subr.mxu0 0.0
      %902 = vmatpush1.msra.mxu0 0.0
      %903 = vmatprep.subr.mxu0 0.0
      %904 = vmatpush1.msra.mxu0 0.0
      %905 = vmatprep.subr.mxu0 0.0
      %906 = vmatpush1.msra.mxu0 0.0
      %907 = vmatprep.subr.mxu0 0.0
      %908 = vmatpush1.msra.mxu0 0.0
      %909 = vmatprep.subr.mxu0 0.0
      %910 = vmatpush1.msra.mxu0 0.0
      %911 = vmatprep.subr.mxu0 0.0
      %912 = vmatpush1.msra.mxu0 0.0
      %913 = vmatprep.subr.mxu0 0.0
      %914 = vmatpush1.msra.mxu0 0.0
      %915 = vmatprep.subr.mxu0 0.0
      %916 = vmatpush1.msra.mxu0 0.0
      %917 = vmatprep.subr.mxu0 0.0
      %918 = vmatpush1.msra.mxu0 0.0
      %919 = vmatprep.subr.mxu0 0.0
      %920 = vmatpush1.msra.mxu0 0.0
      %921 = vmatprep.subr.mxu0 0.0
      %922 = vmatpush1.msra.mxu0 0.0
      %923 = vmatprep.subr.mxu0 0.0
      %924 = vmatpush1.msra.mxu0 0.0
      %925 = vmatprep.subr.mxu0 0.0
      %926 = vmatpush1.msra.mxu0 0.0
      %927 = vmatprep.subr.mxu0 0.0
      %928 = vmatpush1.msra.mxu0 0.0
      %929 = vmatprep.subr.mxu0 0.0
      %930 = vmatpush1.msra.mxu0 0.0
      %931 = vmatprep.subr.mxu0 0.0
      %932 = vmatpush1.msra.mxu0 0.0
      %933 = vmatprep.subr.mxu0 0.0
      %934 = vmatpush1.msra.mxu0 0.0
      %935 = vmatprep.subr.mxu0 0.0
      %936 = vmatpush1.msra.mxu0 0.0
      %937 = vmatprep.subr.mxu0 0.0
      %938 = vmatpush1.msra.mxu0 0.0
      %939 = vmatprep.subr.mxu0 0.0
      %940 = vmatpush1.msra.mxu0 0.0
      %941 = vmatprep.subr.mxu0 0.0
      %942 = vmatpush1.msra.mxu0 0.0
      %943 = vmatprep.subr.mxu0 0.0
      %944 = vmatpush1.msra.mxu0 0.0
      %945 = vmatprep.subr.mxu0 0.0
      %946 = vmatpush1.msra.mxu0 0.0
      %947 = vmatprep.subr.mxu0 0.0
      %948 = vmatpush1.msra.mxu0 0.0
      %949 = vmatprep.subr.mxu0 0.0
      %950 = vmatpush1.msra.mxu0 0.0
      %951 = vmatprep.subr.mxu0 0.0
      %952 = vmatpush1.msra.mxu0 0.0
      %953 = vmatprep.subr.mxu0 0.0
      %954 = vmatpush1.msra.mxu0 0.0
      %955 = vmatprep.subr.mxu0 0.0
      %956 = vmatpush1.msra.mxu0 0.0
      %957 = vmatprep.mubr.f32.mxu0 0.0
      %v958 = vand.u32 %v772, 4294901760
      %959 = vmatmul.mubr.f32.gmra.mrb[0].mxu0 %v958
      %v960 = vpop.f32.mrb[0].mxu0
      %v961 = vadd.f32 %v852, %v960
      %v962 = vpop.f32.mrb[0].mxu0
      %963 = vmatprep.mubr.f32.mxu0 0.0
      %v964 = vand.u32 %v774, 4294901760
      %965 = vmatmul.mubr.f32.gmra.mrb[0].mxu0 %v964
      %v966 = vpop.f32.mrb[0].mxu0
      %v967 = vadd.f32 %v862, %v966
      %v968 = vpop.f32.mrb[0].mxu0
      %969 = vmatprep.mubr.f32.mxu0 0.0
      %v970 = vand.u32 %v776, 4294901760
      %971 = vmatmul.mubr.f32.gmra.mrb[0].mxu0 %v970
      %v972 = vpop.f32.mrb[0].mxu0
      %v973 = vadd.f32 %v872, %v972
      %v974 = vpop.f32.mrb[0].mxu0
      %975 = vmatprep.mubr.f32.mxu0 0.0
      %v976 = vand.u32 %v778, 4294901760
      %977 = vmatmul.mubr.f32.gmra.mrb[0].mxu0 %v976
      %v978 = vpop.f32.mrb[0].mxu0
      %v979 = vadd.f32 %v882, %v978
      %v980 = vpop.f32.mrb[0].mxu0
      %981 = vdwg.mxu0
      %982 = vmatprep.subr.mxu0 0.0
      %v983 = vsub.f32 %v169, %v169
      %984 = vmatpush1.msra.mxu0 %v983
      %985 = vmatprep.subr.mxu0 0.0
      %v986 = vsub.f32 %v170, %v170
      %987 = vmatpush1.msra.mxu0 %v986
      %988 = vmatprep.subr.mxu0 0.0
      %989 = vmatpush1.msra.mxu0 0.0
      %990 = vmatprep.subr.mxu0 0.0
      %991 = vmatpush1.msra.mxu0 0.0
      %992 = vmatprep.subr.mxu0 0.0
      %993 = vmatpush1.msra.mxu0 0.0
      %994 = vmatprep.subr.mxu0 0.0
      %995 = vmatpush1.msra.mxu0 0.0
      %996 = vmatprep.subr.mxu0 0.0
      %997 = vmatpush1.msra.mxu0 0.0
      %998 = vmatprep.subr.mxu0 0.0
      %999 = vmatpush1.msra.mxu0 0.0
      %1000 = vmatprep.subr.mxu0 0.0
      %1001 = vmatpush1.msra.mxu0 0.0
      %1002 = vmatprep.subr.mxu0 0.0
      %1003 = vmatpush1.msra.mxu0 0.0
      %1004 = vmatprep.subr.mxu0 0.0
      %1005 = vmatpush1.msra.mxu0 0.0
      %1006 = vmatprep.subr.mxu0 0.0
      %1007 = vmatpush1.msra.mxu0 0.0
      %1008 = vmatprep.subr.mxu0 0.0
      %1009 = vmatpush1.msra.mxu0 0.0
      %1010 = vmatprep.subr.mxu0 0.0
      %1011 = vmatpush1.msra.mxu0 0.0
      %1012 = vmatprep.subr.mxu0 0.0
      %1013 = vmatpush1.msra.mxu0 0.0
      %1014 = vmatprep.subr.mxu0 0.0
      %1015 = vmatpush1.msra.mxu0 0.0
      %1016 = vmatprep.subr.mxu0 0.0
      %1017 = vmatpush1.msra.mxu0 0.0
      %1018 = vmatprep.subr.mxu0 0.0
      %1019 = vmatpush1.msra.mxu0 0.0
      %1020 = vmatprep.subr.mxu0 0.0
      %1021 = vmatpush1.msra.mxu0 0.0
      %1022 = vmatprep.subr.mxu0 0.0
      %1023 = vmatpush1.msra.mxu0 0.0
      %1024 = vmatprep.subr.mxu0 0.0
      %1025 = vmatpush1.msra.mxu0 0.0
      %1026 = vmatprep.subr.mxu0 0.0
      %1027 = vmatpush1.msra.mxu0 0.0
      %1028 = vmatprep.subr.mxu0 0.0
      %1029 = vmatpush1.msra.mxu0 0.0
      %1030 = vmatprep.subr.mxu0 0.0
      %1031 = vmatpush1.msra.mxu0 0.0
      %1032 = vmatprep.subr.mxu0 0.0
      %1033 = vmatpush1.msra.mxu0 0.0
      %1034 = vmatprep.subr.mxu0 0.0
      %1035 = vmatpush1.msra.mxu0 0.0
      %1036 = vmatprep.subr.mxu0 0.0
      %1037 = vmatpush1.msra.mxu0 0.0
      %1038 = vmatprep.subr.mxu0 0.0
      %1039 = vmatpush1.msra.mxu0 0.0
      %1040 = vmatprep.subr.mxu0 0.0
      %1041 = vmatpush1.msra.mxu0 0.0
      %1042 = vmatprep.subr.mxu0 0.0
      %1043 = vmatpush1.msra.mxu0 0.0
      %1044 = vmatprep.subr.mxu0 0.0
      %1045 = vmatpush1.msra.mxu0 0.0
      %1046 = vmatprep.subr.mxu0 0.0
      %1047 = vmatpush1.msra.mxu0 0.0
      %1048 = vmatprep.mubr.f32.mxu0 0.0
      %v1049 = vand.u32 %v772, 4294901760
      %v1050 = vsub.f32 %v772, %v1049
      %1051 = vmatmul.mubr.f32.gmra.mrb[0].mxu0 %v1050
      %v1052 = vpop.f32.mrb[0].mxu0
      %v1053 = vadd.f32 %v961, %v1052
      %v1054 = vpop.f32.mrb[0].mxu0
      %1055 = vmatprep.mubr.f32.mxu0 0.0
      %v1056 = vand.u32 %v774, 4294901760
      %v1057 = vsub.f32 %v774, %v1056
      %1058 = vmatmul.mubr.f32.gmra.mrb[0].mxu0 %v1057
      %v1059 = vpop.f32.mrb[0].mxu0
      %v1060 = vadd.f32 %v967, %v1059
      %v1061 = vpop.f32.mrb[0].mxu0
      %1062 = vmatprep.mubr.f32.mxu0 0.0
      %v1063 = vand.u32 %v776, 4294901760
      %v1064 = vsub.f32 %v776, %v1063
      %1065 = vmatmul.mubr.f32.gmra.mrb[0].mxu0 %v1064
      %v1066 = vpop.f32.mrb[0].mxu0
      %v1067 = vadd.f32 %v973, %v1066
      %v1068 = vpop.f32.mrb[0].mxu0
      %1069 = vmatprep.mubr.f32.mxu0 0.0
      %v1070 = vand.u32 %v778, 4294901760
      %v1071 = vsub.f32 %v778, %v1070
      %1072 = vmatmul.mubr.f32.gmra.mrb[0].mxu0 %v1071
      %v1073 = vpop.f32.mrb[0].mxu0
      %v1074 = vadd.f32 %v979, %v1073
      %v1075 = vpop.f32.mrb[0].mxu0
      %1076 = vdwg.mxu0
      %1077 = vmatprep.subr.mxu0 0.0
      %1078 = vmatpush1.msra.mxu0 %v169
      %1079 = vmatprep.subr.mxu0 0.0
      %1080 = vmatpush1.msra.mxu0 %v170
      %1081 = vmatprep.subr.mxu0 0.0
      %1082 = vmatpush1.msra.mxu0 0.0
      %1083 = vmatprep.subr.mxu0 0.0
      %1084 = vmatpush1.msra.mxu0 0.0
      %1085 = vmatprep.subr.mxu0 0.0
      %1086 = vmatpush1.msra.mxu0 0.0
      %1087 = vmatprep.subr.mxu0 0.0
      %1088 = vmatpush1.msra.mxu0 0.0
      %1089 = vmatprep.subr.mxu0 0.0
      %1090 = vmatpush1.msra.mxu0 0.0
      %1091 = vmatprep.subr.mxu0 0.0
      %1092 = vmatpush1.msra.mxu0 0.0
      %1093 = vmatprep.subr.mxu0 0.0
      %1094 = vmatpush1.msra.mxu0 0.0
      %1095 = vmatprep.subr.mxu0 0.0
      %1096 = vmatpush1.msra.mxu0 0.0
      %1097 = vmatprep.subr.mxu0 0.0
      %1098 = vmatpush1.msra.mxu0 0.0
      %1099 = vmatprep.subr.mxu0 0.0
      %1100 = vmatpush1.msra.mxu0 0.0
      %1101 = vmatprep.subr.mxu0 0.0
      %1102 = vmatpush1.msra.mxu0 0.0
      %1103 = vmatprep.subr.mxu0 0.0
      %1104 = vmatpush1.msra.mxu0 0.0
      %1105 = vmatprep.subr.mxu0 0.0
      %1106 = vmatpush1.msra.mxu0 0.0
      %1107 = vmatprep.subr.mxu0 0.0
      %1108 = vmatpush1.msra.mxu0 0.0
      %1109 = vmatprep.subr.mxu0 0.0
      %1110 = vmatpush1.msra.mxu0 0.0
      %1111 = vmatprep.subr.mxu0 0.0
      %1112 = vmatpush1.msra.mxu0 0.0
      %1113 = vmatprep.subr.mxu0 0.0
      %1114 = vmatpush1.msra.mxu0 0.0
      %1115 = vmatprep.subr.mxu0 0.0
      %1116 = vmatpush1.msra.mxu0 0.0
      %1117 = vmatprep.subr.mxu0 0.0
      %1118 = vmatpush1.msra.mxu0 0.0
      %1119 = vmatprep.subr.mxu0 0.0
      %1120 = vmatpush1.msra.mxu0 0.0
      %1121 = vmatprep.subr.mxu0 0.0
      %1122 = vmatpush1.msra.mxu0 0.0
      %1123 = vmatprep.subr.mxu0 0.0
      %1124 = vmatpush1.msra.mxu0 0.0
      %1125 = vmatprep.subr.mxu0 0.0
      %1126 = vmatpush1.msra.mxu0 0.0
      %1127 = vmatprep.subr.mxu0 0.0
      %1128 = vmatpush1.msra.mxu0 0.0
      %1129 = vmatprep.subr.mxu0 0.0
      %1130 = vmatpush1.msra.mxu0 0.0
      %1131 = vmatprep.subr.mxu0 0.0
      %1132 = vmatpush1.msra.mxu0 0.0
      %1133 = vmatprep.subr.mxu0 0.0
      %1134 = vmatpush1.msra.mxu0 0.0
      %1135 = vmatprep.subr.mxu0 0.0
      %1136 = vmatpush1.msra.mxu0 0.0
      %1137 = vmatprep.subr.mxu0 0.0
      %1138 = vmatpush1.msra.mxu0 0.0
      %1139 = vmatprep.subr.mxu0 0.0
      %1140 = vmatpush1.msra.mxu0 0.0
      %1141 = vmatprep.mubr.f32.mxu0 0.0
      %v1142 = vand.u32 %v772, 4294901760
      %v1143 = vsub.f32 %v772, %v1142
      %v1144 = vand.u32 %v1143, 4294901760
      %1145 = vmatmul.mubr.f32.gmra.mrb[0].mxu0 %v1144
      %v1146 = vpop.f32.mrb[0].mxu0
      %v1147 = vadd.f32 %v1053, %v1146
      %v1148 = vpop.f32.mrb[0].mxu0
      %1149 = vmatprep.mubr.f32.mxu0 0.0
      %v1150 = vand.u32 %v774, 4294901760
      %v1151 = vsub.f32 %v774, %v1150
      %v1152 = vand.u32 %v1151, 4294901760
      %1153 = vmatmul.mubr.f32.gmra.mrb[0].mxu0 %v1152
      %v1154 = vpop.f32.mrb[0].mxu0
      %v1155 = vadd.f32 %v1060, %v1154
      %v1156 = vpop.f32.mrb[0].mxu0
      %1157 = vmatprep.mubr.f32.mxu0 0.0
      %v1158 = vand.u32 %v776, 4294901760
      %v1159 = vsub.f32 %v776, %v1158
      %v1160 = vand.u32 %v1159, 4294901760
      %1161 = vmatmul.mubr.f32.gmra.mrb[0].mxu0 %v1160
      %v1162 = vpop.f32.mrb[0].mxu0
      %v1163 = vadd.f32 %v1067, %v1162
      %v1164 = vpop.f32.mrb[0].mxu0
      %1165 = vmatprep.mubr.f32.mxu0 0.0
      %v1166 = vand.u32 %v778, 4294901760
      %v1167 = vsub.f32 %v778, %v1166
      %v1168 = vand.u32 %v1167, 4294901760
      %1169 = vmatmul.mubr.f32.gmra.mrb[0].mxu0 %v1168
      %v1170 = vpop.f32.mrb[0].mxu0
      %v1171 = vadd.f32 %v1074, %v1170
      %v1172 = vpop.f32.mrb[0].mxu0
      %1173 = vdwg.mxu0
      %1174 = vmatprep.subr.mxu0 0.0
      %v1175 = vsub.f32 %v169, %v169
      %v1176 = vand.u32 %v1175, 4294901760
      %1177 = vmatpush1.msra.mxu0 %v1176
      %1178 = vmatprep.subr.mxu0 0.0
      %v1179 = vsub.f32 %v170, %v170
      %v1180 = vand.u32 %v1179, 4294901760
      %1181 = vmatpush1.msra.mxu0 %v1180
      %1182 = vmatprep.subr.mxu0 0.0
      %1183 = vmatpush1.msra.mxu0 0.0
      %1184 = vmatprep.subr.mxu0 0.0
      %1185 = vmatpush1.msra.mxu0 0.0
      %1186 = vmatprep.subr.mxu0 0.0
      %1187 = vmatpush1.msra.mxu0 0.0
      %1188 = vmatprep.subr.mxu0 0.0
      %1189 = vmatpush1.msra.mxu0 0.0
      %1190 = vmatprep.subr.mxu0 0.0
      %1191 = vmatpush1.msra.mxu0 0.0
      %1192 = vmatprep.subr.mxu0 0.0
      %1193 = vmatpush1.msra.mxu0 0.0
      %1194 = vmatprep.subr.mxu0 0.0
      %1195 = vmatpush1.msra.mxu0 0.0
      %1196 = vmatprep.subr.mxu0 0.0
      %1197 = vmatpush1.msra.mxu0 0.0
      %1198 = vmatprep.subr.mxu0 0.0
      %1199 = vmatpush1.msra.mxu0 0.0
      %1200 = vmatprep.subr.mxu0 0.0
      %1201 = vmatpush1.msra.mxu0 0.0
      %1202 = vmatprep.subr.mxu0 0.0
      %1203 = vmatpush1.msra.mxu0 0.0
      %1204 = vmatprep.subr.mxu0 0.0
      %1205 = vmatpush1.msra.mxu0 0.0
      %1206 = vmatprep.subr.mxu0 0.0
      %1207 = vmatpush1.msra.mxu0 0.0
      %1208 = vmatprep.subr.mxu0 0.0
      %1209 = vmatpush1.msra.mxu0 0.0
      %1210 = vmatprep.subr.mxu0 0.0
      %1211 = vmatpush1.msra.mxu0 0.0
      %1212 = vmatprep.subr.mxu0 0.0
      %1213 = vmatpush1.msra.mxu0 0.0
      %1214 = vmatprep.subr.mxu0 0.0
      %1215 = vmatpush1.msra.mxu0 0.0
      %1216 = vmatprep.subr.mxu0 0.0
      %1217 = vmatpush1.msra.mxu0 0.0
      %1218 = vmatprep.subr.mxu0 0.0
      %1219 = vmatpush1.msra.mxu0 0.0
      %1220 = vmatprep.subr.mxu0 0.0
      %1221 = vmatpush1.msra.mxu0 0.0
      %1222 = vmatprep.subr.mxu0 0.0
      %1223 = vmatpush1.msra.mxu0 0.0
      %1224 = vmatprep.subr.mxu0 0.0
      %1225 = vmatpush1.msra.mxu0 0.0
      %1226 = vmatprep.subr.mxu0 0.0
      %1227 = vmatpush1.msra.mxu0 0.0
      %1228 = vmatprep.subr.mxu0 0.0
      %1229 = vmatpush1.msra.mxu0 0.0
      %1230 = vmatprep.subr.mxu0 0.0
      %1231 = vmatpush1.msra.mxu0 0.0
      %1232 = vmatprep.subr.mxu0 0.0
      %1233 = vmatpush1.msra.mxu0 0.0
      %1234 = vmatprep.subr.mxu0 0.0
      %1235 = vmatpush1.msra.mxu0 0.0
      %1236 = vmatprep.subr.mxu0 0.0
      %1237 = vmatpush1.msra.mxu0 0.0
      %1238 = vmatprep.subr.mxu0 0.0
      %1239 = vmatpush1.msra.mxu0 0.0
      %1240 = vmatprep.subr.mxu0 0.0
      %1241 = vmatpush1.msra.mxu0 0.0
      %1242 = vmatprep.mubr.f32.mxu0 0.0
      %v1243 = vand.u32 %v772, 4294901760
      %1244 = vmatmul.mubr.f32.gmra.mrb[0].mxu0 %v1243
      %v1245 = vpop.f32.mrb[0].mxu0
      %v1246 = vadd.f32 %v1147, %v1245
      %v1247 = vpop.f32.mrb[0].mxu0
      %1248 = vmatprep.mubr.f32.mxu0 0.0
      %v1249 = vand.u32 %v774, 4294901760
      %1250 = vmatmul.mubr.f32.gmra.mrb[0].mxu0 %v1249
      %v1251 = vpop.f32.mrb[0].mxu0
      %v1252 = vadd.f32 %v1155, %v1251
      %v1253 = vpop.f32.mrb[0].mxu0
      %1254 = vmatprep.mubr.f32.mxu0 0.0
      %v1255 = vand.u32 %v776, 4294901760
      %1256 = vmatmul.mubr.f32.gmra.mrb[0].mxu0 %v1255
      %v1257 = vpop.f32.mrb[0].mxu0
      %v1258 = vadd.f32 %v1163, %v1257
      %v1259 = vpop.f32.mrb[0].mxu0
      %1260 = vmatprep.mubr.f32.mxu0 0.0
      %v1261 = vand.u32 %v778, 4294901760
      %1262 = vmatmul.mubr.f32.gmra.mrb[0].mxu0 %v1261
      %v1263 = vpop.f32.mrb[0].mxu0
      %v1264 = vadd.f32 %v1171, %v1263
      %v1265 = vpop.f32.mrb[0].mxu0
      %1266 = vdwg.mxu0
      %1267 = vmatprep.subr.mxu0 0.0
      %1268 = vmatpush1.msra.mxu0 %v169
      %1269 = vmatprep.subr.mxu0 0.0
      %1270 = vmatpush1.msra.mxu0 %v170
      %1271 = vmatprep.subr.mxu0 0.0
      %1272 = vmatpush1.msra.mxu0 0.0
      %1273 = vmatprep.subr.mxu0 0.0
      %1274 = vmatpush1.msra.mxu0 0.0
      %1275 = vmatprep.subr.mxu0 0.0
      %1276 = vmatpush1.msra.mxu0 0.0
      %1277 = vmatprep.subr.mxu0 0.0
      %1278 = vmatpush1.msra.mxu0 0.0
      %1279 = vmatprep.subr.mxu0 0.0
      %1280 = vmatpush1.msra.mxu0 0.0
      %1281 = vmatprep.subr.mxu0 0.0
      %1282 = vmatpush1.msra.mxu0 0.0
      %1283 = vmatprep.subr.mxu0 0.0
      %1284 = vmatpush1.msra.mxu0 0.0
      %1285 = vmatprep.subr.mxu0 0.0
      %1286 = vmatpush1.msra.mxu0 0.0
      %1287 = vmatprep.subr.mxu0 0.0
      %1288 = vmatpush1.msra.mxu0 0.0
      %1289 = vmatprep.subr.mxu0 0.0
      %1290 = vmatpush1.msra.mxu0 0.0
      %1291 = vmatprep.subr.mxu0 0.0
      %1292 = vmatpush1.msra.mxu0 0.0
      %1293 = vmatprep.subr.mxu0 0.0
      %1294 = vmatpush1.msra.mxu0 0.0
      %1295 = vmatprep.subr.mxu0 0.0
      %1296 = vmatpush1.msra.mxu0 0.0
      %1297 = vmatprep.subr.mxu0 0.0
      %1298 = vmatpush1.msra.mxu0 0.0
      %1299 = vmatprep.subr.mxu0 0.0
      %1300 = vmatpush1.msra.mxu0 0.0
      %1301 = vmatprep.subr.mxu0 0.0
      %1302 = vmatpush1.msra.mxu0 0.0
      %1303 = vmatprep.subr.mxu0 0.0
      %1304 = vmatpush1.msra.mxu0 0.0
      %1305 = vmatprep.subr.mxu0 0.0
      %1306 = vmatpush1.msra.mxu0 0.0
      %1307 = vmatprep.subr.mxu0 0.0
      %1308 = vmatpush1.msra.mxu0 0.0
      %1309 = vmatprep.subr.mxu0 0.0
      %1310 = vmatpush1.msra.mxu0 0.0
      %1311 = vmatprep.subr.mxu0 0.0
      %1312 = vmatpush1.msra.mxu0 0.0
      %1313 = vmatprep.subr.mxu0 0.0
      %1314 = vmatpush1.msra.mxu0 0.0
      %1315 = vmatprep.subr.mxu0 0.0
      %1316 = vmatpush1.msra.mxu0 0.0
      %1317 = vmatprep.subr.mxu0 0.0
      %1318 = vmatpush1.msra.mxu0 0.0
      %1319 = vmatprep.subr.mxu0 0.0
      %1320 = vmatpush1.msra.mxu0 0.0
      %1321 = vmatprep.subr.mxu0 0.0
      %1322 = vmatpush1.msra.mxu0 0.0
      %1323 = vmatprep.subr.mxu0 0.0
      %1324 = vmatpush1.msra.mxu0 0.0
      %1325 = vmatprep.subr.mxu0 0.0
      %1326 = vmatpush1.msra.mxu0 0.0
      %1327 = vmatprep.subr.mxu0 0.0
      %1328 = vmatpush1.msra.mxu0 0.0
      %1329 = vmatprep.subr.mxu0 0.0
      %1330 = vmatpush1.msra.mxu0 0.0
      %1331 = vmatprep.mubr.f32.mxu0 0.0
      %v1332 = vand.u32 %v772, 4294901760
      %1333 = vmatmul.mubr.f32.gmra.mrb[0].mxu0 %v1332
      %v1334 = vpop.f32.mrb[0].mxu0
      %v1335 = vadd.f32 %v1246, %v1334
      %v1336 = vpop.f32.mrb[0].mxu0
      %1337 = vmatprep.mubr.f32.mxu0 0.0
      %v1338 = vand.u32 %v774, 4294901760
      %1339 = vmatmul.mubr.f32.gmra.mrb[0].mxu0 %v1338
      %v1340 = vpop.f32.mrb[0].mxu0
      %v1341 = vadd.f32 %v1252, %v1340
      %v1342 = vpop.f32.mrb[0].mxu0
      %1343 = vmatprep.mubr.f32.mxu0 0.0
      %v1344 = vand.u32 %v776, 4294901760
      %1345 = vmatmul.mubr.f32.gmra.mrb[0].mxu0 %v1344
      %v1346 = vpop.f32.mrb[0].mxu0
      %v1347 = vadd.f32 %v1258, %v1346
      %v1348 = vpop.f32.mrb[0].mxu0
      %1349 = vmatprep.mubr.f32.mxu0 0.0
      %v1350 = vand.u32 %v778, 4294901760
      %1351 = vmatmul.mubr.f32.gmra.mrb[0].mxu0 %v1350
      %v1352 = vpop.f32.mrb[0].mxu0
      %v1353 = vadd.f32 %v1264, %v1352
      %v1354 = vpop.f32.mrb[0].mxu0
      %1355 = vdwg.mxu0
      %vm1356 = vcmask 64512
      %1357 = vst.msk [vmem:[%s154] sm:$0xff] %vm1356, %v743
      %1358 = vst.msk [vmem:[%s154 + $0x8] sm:$0xff] %vm1356, %v749
      %1359 = vst.msk [vmem:[%s154 + $0x10] sm:$0xff] %vm1356, %v755
      %1360 = vst.msk [vmem:[%s154 + $0x18] sm:$0xff] %vm1356, %v761
      %s1361 = scalar_lea.vmem %s154, 32
      %1362 = vst.msk [vmem:[%s1361] sm:$0xff] %vm1356, %v1335
      %1363 = vst.msk [vmem:[%s1361 + $0x8] sm:$0xff] %vm1356, %v1341
      %1364 = vst.msk [vmem:[%s1361 + $0x10] sm:$0xff] %vm1356, %v1347
      %1365 = vst.msk [vmem:[%s1361 + $0x18] sm:$0xff] %vm1356, %v1353
      %1370 = vrot.lane.b32.xlu0 %v743, 120
      %v1371 = vpop.permute.xlu0 %1370
      %1372 = vrot.lane.b32.xlu0 %v749, 120
      %v1373 = vpop.permute.xlu0 %1372
      %1374 = vrot.lane.b32.xlu0 %v755, 120
      %v1375 = vpop.permute.xlu0 %1374
      %1376 = vrot.lane.b32.xlu0 %v761, 120
      %v1377 = vpop.permute.xlu0 %1376
      %s1382 = scalar_lea.vmem %s154, 64
      %1383 = vst.msk [vmem:[%s1382] sm:$0xff] %vm1356, %v1371
      %1384 = vst.msk [vmem:[%s1382 + $0x8] sm:$0xff] %vm1356, %v1373
      %1385 = vst.msk [vmem:[%s1382 + $0x10] sm:$0xff] %vm1356, %v1375
      %1386 = vst.msk [vmem:[%s1382 + $0x18] sm:$0xff] %vm1356, %v1377
      %1391 = vrot.lane.b32.xlu0 %v1335, 120
      %v1392 = vpop.permute.xlu0 %1391
      %1393 = vrot.lane.b32.xlu0 %v1341, 120
      %v1394 = vpop.permute.xlu0 %1393
      %1395 = vrot.lane.b32.xlu0 %v1347, 120
      %v1396 = vpop.permute.xlu0 %1395
      %1397 = vrot.lane.b32.xlu0 %v1353, 120
      %v1398 = vpop.permute.xlu0 %1397
      %s1403 = scalar_lea.vmem %s154, 96
      %1404 = vst.msk [vmem:[%s1403] sm:$0xff] %vm1356, %v1392
      %1405 = vst.msk [vmem:[%s1403 + $0x8] sm:$0xff] %vm1356, %v1394
      %1406 = vst.msk [vmem:[%s1403 + $0x10] sm:$0xff] %vm1356, %v1396
      %1407 = vst.msk [vmem:[%s1403 + $0x18] sm:$0xff] %vm1356, %v1398
      %s1408 = smul.u32 4, %s17
      %p1409 = scmp.lt.s32.totalorder %s16, 1
      %s1410 = scalar_select %p1409, %s16, 1
      %p1411 = scmp.lt.s32.totalorder %s1408, 3
      %s1412 = scalar_select %p1411, %s1408, 3
      %s1413 = smul.addr %s1410, 16
      %s1414 = sadd.s32 %s1412, %s1413
      %s1415 = smul.addr %s1414, 8
      %s1416 = scalar_lea.vmem %s1, %s1415
      // Predicated region
      $region25: #{space_to_depth.1} parent=23 // pred_check
        %p1417 = pneg %p72
      $region26: #{space_to_depth.1} parent=23 // pred_check_branch
        %1419 = sbr.rel (%p1417) target = $region28
      $region27: #{space_to_depth.1} parent=23 // pred_region
        %s1420 = smul.u32 4, %s17
      $region28: #{space_to_depth.1} parent=23 // pred_fallthru
        _
    $region24: #{space_to_depth.1} parent=5 // pred_fallthru
      _
    %p1421 = scmp.le.s32.totalorder 2, %s7
    // Predicated region
    $region29: #{space_to_depth.1} parent=5 // pred_check
      %p1422 = pneg %p1421
    $region30: #{space_to_depth.1} parent=5 // pred_check_branch
      %1424 = sbr.rel (%p1422) target = $region32
    $region31: #{space_to_depth.1} parent=5 // pred_region
      %s1425 = ssub.s32 %s7, 2
      // Predicated region
      $region33: #{space_to_depth.1} parent=31 // pred_check
        %p1426 = pneg %p78
      $region34: #{space_to_depth.1} parent=31 // pred_check_branch
        %1428 = sbr.rel (%p1426) target = $region36
      $region35: #{space_to_depth.1} parent=31 // pred_region
        %s1429 = smul.u32 4, %s19
        %p1430 = scmp.lt.s32.totalorder %s18, 1
        %s1431 = scalar_select %p1430, %s18, 1
        %p1432 = scmp.lt.s32.totalorder %s1429, 3
        %s1433 = scalar_select %p1432, %s1429, 3
        %s1434 = smul.addr %s1431, 16
        %s1435 = sadd.s32 %s1433, %s1434
        %s1436 = smul.addr %s1435, 8
        %s1437 = scalar_lea.vmem %s1, %s1436
      $region36: #{space_to_depth.1} parent=31 // pred_fallthru
        _
    $region32: #{space_to_depth.1} parent=5 // pred_fallthru
      _
  $region6: #{space_to_depth.1} parent=0 // loop_footer
    %s11 = sadd.s32 1, %s7
  $region7: #{space_to_depth.1} parent=0 // loop_footer_branch
    %6 = sbr.rel target = $region3
  $region8: #{space_to_depth.1} parent=0 // loop_exit
    _

</llo_original>
